<compile_context>
chip_gen: v5e
topology: v5e:2x2
jax: 0.10.0
libtpu: 0.0.40
codegen_flags: <defaults>
</compile_context>

<pallas_src>
import functools
import math

import jax
import jax.numpy as jnp
from jax import lax
from jax.experimental import pallas as pl
from jax.experimental.pallas import tpu as pltpu  # noqa: F401  (TPU backend)

# ---------------- model dims (small, consistent with a decoder block) --------
B = 2            # batch
S = 8            # sequence length
H = 32           # hidden size
NH = 4           # attention heads
DH = H // NH     # head dim
I = 64           # MLP intermediate size
M = B * S        # batch folded into rows
EPS = 1e-6
NEG = -1e30


# ================================ kernel =====================================
def parallel_block_kernel(x_ref, gamma_ref, wf_ref, wo_ref, cos_ref, sin_ref,
                          bias_ref, ktm_ref, vm_ref, *rest, prefill: bool):
    if prefill:
        (o_ref,) = rest
        wd_ref = None
    else:
        wd_ref, o_ref = rest

    x = x_ref[...]                                        # (M, H) f32

    # ---- input RMSNorm (f32 elementwise, output quantized to bf16 "half") ----
    ms = jnp.mean(x * x, axis=-1, keepdims=True)
    y = x * lax.rsqrt(ms + EPS) * gamma_ref[...]
    yh = y.astype(jnp.bfloat16)                           # MXU operand

    # ---- single fused projection ---------------------------------------------
    # columns: [q | q_rot | k | k_rot (| gate | up) | v]  (rot = rotate-half,
    # sign + permutation folded into weights; 1/sqrt(DH) folded into Wq)
    proj = jnp.dot(yh, wf_ref[...], preferred_element_type=jnp.float32)

    q = proj[:, 0 * H:1 * H]
    qr = proj[:, 1 * H:2 * H]
    k = proj[:, 2 * H:3 * H]
    kr = proj[:, 3 * H:4 * H]
    if prefill:
        v = proj[:, 4 * H:5 * H]
    else:
        g = proj[:, 4 * H:4 * H + I]
        u = proj[:, 4 * H + I:4 * H + 2 * I]
        v = proj[:, 4 * H + 2 * I:4 * H + 2 * I + H]

    # ---- RoPE on all heads at once (f32 VPU; v5e has no bf16 VPU) -------------
    cos = cos_ref[...]                                    # (M, H)
    sin = sin_ref[...]
    qro = q * cos + qr * sin
    kro = k * cos + kr * sin

    # ---- attention as 3 block-diagonal matmuls --------------------------------
    # (1) all head scores at once: transpose kro ONCE, lane-tile x NH, mask to
    #     block-diagonal K^T, then a single (M,H)@(H,NH*M) dot.
    kt = kro.T                                            # (H, M), one XLU transpose
    kt_bd = (jnp.concatenate([kt] * NH, axis=1) * ktm_ref[...]).astype(jnp.bfloat16)
    s = jnp.dot(qro.astype(jnp.bfloat16), kt_bd,
                preferred_element_type=jnp.float32)       # (M, NH*M)
    s = s + bias_ref[...]                                 # hoisted causal/block bias

    # Global row max is valid: it cancels in the unnormalized-softmax ratio.
    m = jnp.max(s, axis=-1, keepdims=True)
    p = jnp.exp(s - m)                                    # unnormalized probs, f32

    # (2) all per-head contexts AND per-head denominators in one dot:
    #     RHS = [ blockdiag(V) | blockmask ]  -> (NH*M, 2H)
    vmask = vm_ref[...]                                   # (NH*M, H) f32
    v_stack = jnp.concatenate([v] * NH, axis=0) * vmask   # (NH*M, H)
    rhs = jnp.concatenate([v_stack, vmask], axis=1).astype(jnp.bfloat16)
    cd = jnp.dot(p.astype(jnp.bfloat16), rhs,
                 preferred_element_type=jnp.float32)      # (M, 2H)
    ctx = cd[:, :H] * pl.reciprocal(cd[:, H:], approx=True)   # normalized contexts

    # (3) output projection: one (M,H)@(H,H) dot against the original wo.
    y1 = jnp.dot(ctx.astype(jnp.bfloat16), wo_ref[...],
                 preferred_element_type=jnp.float32)

    if prefill:
        o_ref[...] = (x + y1).astype(o_ref.dtype)
        return

    # ---- GatedMLP (SiLU) branch ----------------------------------------------
    act = g * jax.nn.sigmoid(g) * u                        # f32 elementwise
    y2 = jnp.dot(act.astype(jnp.bfloat16), wd_ref[...],
                 preferred_element_type=jnp.float32)

    # ---- parallel residual ----------------------------------------------------
    o_ref[...] = (x + y1 + y2).astype(o_ref.dtype)


# ================================ wrapper ====================================
def parallel_decoder_block(x, packed, *, prefill=False, out_dtype=jnp.float32):
    """x: (B, S, H) float32.  packed: dict from pack_params(..., prefill=...)."""
    x2 = x.reshape(M, H)
    args = [x2, packed["gamma"], packed["w_fused"], packed["wo"],
            packed["cos"], packed["sin"], packed["bias"],
            packed["ktmask"], packed["vmask"]]
    if not prefill:
        args.append(packed["wd"])
    kernel = functools.partial(parallel_block_kernel, prefill=prefill)

    # Advisory cost estimate so XLA can schedule/overlap around the tiny call.
    flops = (2 * M * H * packed["w_fused"].shape[1]      # fused projection
             + 2 * M * H * (NH * M)                      # scores
             + 2 * M * (NH * M) * (2 * H)                # contexts + denominators
             + 2 * M * H * H)                            # o-proj
    transcendentals = M * NH * M + M * H + M             # exp + recip + rsqrt
    if not prefill:
        flops += 2 * M * I * H                           # down proj
        transcendentals += M * I                         # sigmoid
    bytes_accessed = sum(int(a.size) * a.dtype.itemsize for a in args)
    bytes_accessed += M * H * jnp.dtype(out_dtype).itemsize

    out = pl.pallas_call(
        kernel,
        out_shape=jax.ShapeDtypeStruct((M, H), out_dtype),
        cost_estimate=pl.CostEstimate(flops=int(flops),
                                      transcendentals=int(transcendentals),
                                      bytes_accessed=int(bytes_accessed)),
    )(*args)
    return out.reshape(B, S, H)


# ---------------- host-side weight / constant packing -------------------------
def _rotate_half_matrix():
    """Signed permutation P with (t @ P) == concat_per_head([-t2, t1])."""
    p = jnp.zeros((H, H), jnp.float32)
    for h in range(NH):
        for d in range(DH // 2):
            p = p.at[h * DH + d + DH // 2, h * DH + d].set(-1.0)
            p = p.at[h * DH + d, h * DH + DH // 2 + d].set(1.0)
    return p


def pack_params(raw, prefill=False):
    bf = lambda w: w.astype(jnp.bfloat16)
    P = _rotate_half_matrix()
    scale = 1.0 / math.sqrt(DH)
    wq_s = raw["wq"] * scale                       # fold 1/sqrt(DH) into Wq
    # column order [q | qr | k | kr | gate | up | v]: every slice stays inside
    # a single 128-lane tile (gate 128..192, up 192..256, v 256..288).
    cols = [wq_s, wq_s @ P, raw["wk"], raw["wk"] @ P]
    if not prefill:
        cols += [raw["wg"], raw["wu"]]
    cols += [raw["wv"]]
    w_fused = bf(jnp.concatenate(cols, axis=1))    # (H, 5H) or (H, 4H + 2I + H)

    # lane-dense RoPE tables, tiled over heads and batch -> (M, H)
    cos_mh = jnp.tile(jnp.tile(raw["cos"], (1, NH)), (B, 1))
    sin_mh = jnp.tile(jnp.tile(raw["sin"], (1, NH)), (B, 1))

    # additive causal + block-diagonal (batch-fold) bias, tiled over heads
    ri = jnp.arange(M)[:, None]
    ci = jnp.arange(M)[None, :]
    ok = (ci <= ri) & ((ci // S) == (ri // S))
    bias = jnp.tile(jnp.where(ok, 0.0, NEG).astype(jnp.float32), (1, NH))  # (M, NH*M)

    # block masks for block-diagonal K^T and V stacking
    kt_r = jnp.arange(H)[:, None] // DH
    kt_c = jnp.arange(NH * M)[None, :] // M
    ktmask = (kt_r == kt_c).astype(jnp.float32)    # (H, NH*M)

    v_r = jnp.arange(NH * M)[:, None] // M
    v_c = jnp.arange(H)[None, :] // DH
    vmask = (v_r == v_c).astype(jnp.float32)       # (NH*M, H)

    packed = {
        "gamma": raw["gamma"].reshape(1, H),
        "w_fused": w_fused,
        "wo": bf(raw["wo"]),
        "cos": cos_mh,
        "sin": sin_mh,
        "bias": bias,
        "ktmask": ktmask,
        "vmask": vmask,
    }
    if not prefill:
        packed["wd"] = bf(raw["wd"])
    return packed


# ---------------- pure-JAX reference (mirrors the module structure) -----------
def _rope_ref(t, cos, sin):
    t1 = t[:, : DH // 2]
    t2 = t[:, DH // 2:]
    rot = jnp.concatenate([-t2, t1], axis=-1)
    return t * cos + rot * sin


def reference(x, raw, prefill=False):
    bf = lambda w: w.astype(jnp.bfloat16)
    dot = lambda a, b: jnp.dot(a, b, preferred_element_type=jnp.float32)
    # 1/sqrt(DH) folded into Wq here too so bf16 quantization points match.
    wq_bf = bf(raw["wq"] * (1.0 / math.sqrt(DH)))
    wk_bf, wv_bf, wo_bf = bf(raw["wk"]), bf(raw["wv"]), bf(raw["wo"])
    wg_bf, wu_bf, wd_bf = bf(raw["wg"]), bf(raw["wu"]), bf(raw["wd"])

    def one(xb):                                          # xb: (S, H)
        ms = jnp.mean(xb * xb, axis=-1, keepdims=True)
        y = xb * lax.rsqrt(ms + EPS) * raw["gamma"]
        yh = y.astype(jnp.bfloat16)
        q, k, v = dot(yh, wq_bf), dot(yh, wk_bf), dot(yh, wv_bf)
        qi = jnp.arange(S)[:, None]
        ki = jnp.arange(S)[None, :]
        causal = ki <= qi
        heads = []
        for h in range(NH):
            qh = _rope_ref(q[:, h * DH:(h + 1) * DH], raw["cos"], raw["sin"])
            kh = _rope_ref(k[:, h * DH:(h + 1) * DH], raw["cos"], raw["sin"])
            vh = v[:, h * DH:(h + 1) * DH]
            s = dot(qh.astype(jnp.bfloat16), kh.astype(jnp.bfloat16).T)
            s = jnp.where(causal, s, NEG)
            p = jax.nn.softmax(s, axis=-1)
            heads.append(dot(p.astype(jnp.bfloat16), vh.astype(jnp.bfloat16)))
        ctx = jnp.concatenate(heads, axis=-1)
        y1 = dot(ctx.astype(jnp.bfloat16), wo_bf)
        if prefill:
            return xb + y1
        g, u = dot(yh, wg_bf), dot(yh, wu_bf)
        act = g * jax.nn.sigmoid(g) * u
        y2 = dot(act.astype(jnp.bfloat16), wd_bf)
        return xb + y1 + y2

    return jax.vmap(one)(x)


def init_raw_params(key):
    ks = jax.random.split(key, 8)
    sc = lambda fan_in: 1.0 / math.sqrt(fan_in)
    inv_freq = 1.0 / (10000.0 ** (jnp.arange(0, DH, 2, dtype=jnp.float32) / DH))
    t = jnp.arange(S, dtype=jnp.float32)
    freqs = jnp.outer(t, inv_freq)                        # (S, DH/2)
    emb = jnp.concatenate([freqs, freqs], axis=-1)        # (S, DH)
    return {
        "gamma": 1.0 + 0.1 * jax.random.normal(ks[0], (H,), jnp.float32),
        "wq": sc(H) * jax.random.normal(ks[1], (H, H), jnp.float32),
        "wk": sc(H) * jax.random.normal(ks[2], (H, H), jnp.float32),
        "wv": sc(H) * jax.random.normal(ks[3], (H, H), jnp.float32),
        "wo": sc(H) * jax.random.normal(ks[4], (H, H), jnp.float32),
        "wg": sc(H) * jax.random.normal(ks[5], (H, I), jnp.float32),
        "wu": sc(H) * jax.random.normal(ks[6], (H, I), jnp.float32),
        "wd": sc(I) * jax.random.normal(ks[7], (I, H), jnp.float32),
        "cos": jnp.cos(emb),
        "sin": jnp.sin(emb),
    }


if __name__ == "__main__":
    key = jax.random.PRNGKey(0)
    kx, kp = jax.random.split(key)
    x = jax.random.normal(kx, (B, S, H), jnp.float32)
    raw = init_raw_params(kp)

    # full path: attention + gated MLP + parallel residual
    packed = pack_params(raw, prefill=False)
    out = jax.block_until_ready(parallel_decoder_block(x, packed, prefill=False))
    ref = reference(x, raw, prefill=False)
    assert out.shape == (B, S, H) and out.dtype == jnp.float32
    assert jnp.allclose(out, ref, rtol=2e-2, atol=2e-2), \
        f"max abs err {jnp.max(jnp.abs(out - ref))}"

    # prefill path: attention only; MLP weights never shipped to the kernel
    packed_pf = pack_params(raw, prefill=True)
    out_pf = jax.block_until_ready(
        parallel_decoder_block(x, packed_pf, prefill=True))
    ref_pf = reference(x, raw, prefill=True)
    assert jnp.allclose(out_pf, ref_pf, rtol=2e-2, atol=2e-2), \
        f"max abs err (prefill) {jnp.max(jnp.abs(out_pf - ref_pf))}"

    print("KERNEL_OK")
</pallas_src>

<mosaic_0001>
module attributes {stable_mosaic.version = 11 : i64} {
  func.func @parallel_block_kernel(%arg0: memref<16x32xf32, #tpu.memory_space<vmem>>, %arg1: memref<1x32xf32, #tpu.memory_space<vmem>>, %arg2: memref<32x288xbf16, #tpu.memory_space<vmem>>, %arg3: memref<32x32xbf16, #tpu.memory_space<vmem>>, %arg4: memref<16x32xf32, #tpu.memory_space<vmem>>, %arg5: memref<16x32xf32, #tpu.memory_space<vmem>>, %arg6: memref<16x64xf32, #tpu.memory_space<vmem>>, %arg7: memref<32x64xf32, #tpu.memory_space<vmem>>, %arg8: memref<64x32xf32, #tpu.memory_space<vmem>>, %arg9: memref<64x32xbf16, #tpu.memory_space<vmem>>, %arg10: memref<16x32xf32, #tpu.memory_space<vmem>>) attributes {dimension_semantics = [], scalar_prefetch = 0 : i64, scratch_operands = 0 : i64, tpu.core_type = #tpu.core_type<tc>} {
    %c0 = arith.constant 0 : index
    %c0_0 = arith.constant 0 : index
    %0 = vector.load %arg0[%c0, %c0_0] : memref<16x32xf32, #tpu.memory_space<vmem>>, vector<16x32xf32>
    %1 = arith.mulf %0, %0 : vector<16x32xf32>
    %cst = arith.constant dense<0.000000e+00> : vector<16xf32>
    %2 = vector.multi_reduction <add>, %1, %cst [1] : vector<16x32xf32> to vector<16xf32>
    %3 = vector.shape_cast %2 : vector<16xf32> to vector<16x1xf32>
    %cst_1 = arith.constant 3.200000e+01 : f32
    %4 = vector.broadcast %cst_1 : f32 to vector<16x1xf32>
    %5 = arith.divf %3, %4 : vector<16x1xf32>
    %cst_2 = arith.constant 9.99999997E-7 : f32
    %6 = vector.broadcast %cst_2 : f32 to vector<16x1xf32>
    %7 = arith.addf %5, %6 : vector<16x1xf32>
    %8 = math.rsqrt %7 : vector<16x1xf32>
    %9 = vector.broadcast %8 : vector<16x1xf32> to vector<16x32xf32>
    %10 = arith.mulf %0, %9 : vector<16x32xf32>
    %c0_3 = arith.constant 0 : index
    %c0_4 = arith.constant 0 : index
    %11 = vector.load %arg1[%c0_3, %c0_4] : memref<1x32xf32, #tpu.memory_space<vmem>>, vector<1x32xf32>
    %12 = vector.broadcast %11 : vector<1x32xf32> to vector<16x32xf32>
    %13 = arith.mulf %10, %12 : vector<16x32xf32>
    %14 = arith.truncf %13 : vector<16x32xf32> to vector<16x32xbf16>
    %c0_5 = arith.constant 0 : index
    %c0_6 = arith.constant 0 : index
    %15 = vector.load %arg2[%c0_5, %c0_6] : memref<32x288xbf16, #tpu.memory_space<vmem>>, vector<32x288xbf16>
    %cst_7 = arith.constant dense<0.000000e+00> : vector<16x288xf32>
    %16 = tpu.matmul %14, %15, %cst_7 {dimension_numbers = #tpu.dot_dimension_numbers<[1], [0], [0], [1], [0, 0, 1, 1], [], []>} : vector<16x32xbf16>, vector<32x288xbf16>, vector<16x288xf32> -> vector<16x288xf32>
    %17 = vector.extract_strided_slice %16 {offsets = [0, 0], sizes = [16, 32], strides = [1, 1]} : vector<16x288xf32> to vector<16x32xf32>
    %18 = vector.extract_strided_slice %16 {offsets = [0, 32], sizes = [16, 32], strides = [1, 1]} : vector<16x288xf32> to vector<16x32xf32>
    %19 = vector.extract_strided_slice %16 {offsets = [0, 64], sizes = [16, 32], strides = [1, 1]} : vector<16x288xf32> to vector<16x32xf32>
    %20 = vector.extract_strided_slice %16 {offsets = [0, 96], sizes = [16, 32], strides = [1, 1]} : vector<16x288xf32> to vector<16x32xf32>
    %21 = vector.extract_strided_slice %16 {offsets = [0, 128], sizes = [16, 64], strides = [1, 1]} : vector<16x288xf32> to vector<16x64xf32>
    %22 = vector.extract_strided_slice %16 {offsets = [0, 192], sizes = [16, 64], strides = [1, 1]} : vector<16x288xf32> to vector<16x64xf32>
    %23 = vector.extract_strided_slice %16 {offsets = [0, 256], sizes = [16, 32], strides = [1, 1]} : vector<16x288xf32> to vector<16x32xf32>
    %c0_8 = arith.constant 0 : index
    %c0_9 = arith.constant 0 : index
    %24 = vector.load %arg4[%c0_8, %c0_9] : memref<16x32xf32, #tpu.memory_space<vmem>>, vector<16x32xf32>
    %c0_10 = arith.constant 0 : index
    %c0_11 = arith.constant 0 : index
    %25 = vector.load %arg5[%c0_10, %c0_11] : memref<16x32xf32, #tpu.memory_space<vmem>>, vector<16x32xf32>
    %26 = arith.mulf %17, %24 : vector<16x32xf32>
    %27 = arith.mulf %18, %25 : vector<16x32xf32>
    %28 = arith.addf %26, %27 : vector<16x32xf32>
    %29 = arith.mulf %19, %24 : vector<16x32xf32>
    %30 = arith.mulf %20, %25 : vector<16x32xf32>
    %31 = arith.addf %29, %30 : vector<16x32xf32>
    %32 = tpu.transpose %31, [1, 0] : vector<16x32xf32> -> vector<32x16xf32>
    %33 = tpu.concatenate %32, %32, %32, %32 in 1 : vector<32x16xf32>, vector<32x16xf32>, vector<32x16xf32>, vector<32x16xf32> -> vector<32x64xf32>
    %c0_12 = arith.constant 0 : index
    %c0_13 = arith.constant 0 : index
    %34 = vector.load %arg7[%c0_12, %c0_13] : memref<32x64xf32, #tpu.memory_space<vmem>>, vector<32x64xf32>
    %35 = arith.mulf %33, %34 : vector<32x64xf32>
    %36 = arith.truncf %35 : vector<32x64xf32> to vector<32x64xbf16>
    %37 = arith.truncf %28 : vector<16x32xf32> to vector<16x32xbf16>
    %cst_14 = arith.constant dense<0.000000e+00> : vector<16x64xf32>
    %38 = tpu.matmul %37, %36, %cst_14 {dimension_numbers = #tpu.dot_dimension_numbers<[1], [0], [0], [1], [0, 0, 1, 1], [], []>} : vector<16x32xbf16>, vector<32x64xbf16>, vector<16x64xf32> -> vector<16x64xf32>
    %c0_15 = arith.constant 0 : index
    %c0_16 = arith.constant 0 : index
    %39 = vector.load %arg6[%c0_15, %c0_16] : memref<16x64xf32, #tpu.memory_space<vmem>>, vector<16x64xf32>
    %40 = arith.addf %38, %39 : vector<16x64xf32>
    %cst_17 = arith.constant dense<0xFF800000> : vector<16xf32>
    %41 = vector.multi_reduction <maximumf>, %40, %cst_17 [1] : vector<16x64xf32> to vector<16xf32>
    %42 = vector.shape_cast %41 : vector<16xf32> to vector<16x1xf32>
    %43 = vector.broadcast %42 : vector<16x1xf32> to vector<16x64xf32>
    %44 = arith.subf %40, %43 : vector<16x64xf32>
    %45 = math.exp %44 : vector<16x64xf32>
    %c0_18 = arith.constant 0 : index
    %c0_19 = arith.constant 0 : index
    %46 = vector.load %arg8[%c0_18, %c0_19] : memref<64x32xf32, #tpu.memory_space<vmem>>, vector<64x32xf32>
    %47 = tpu.concatenate %23, %23, %23, %23 in 0 : vector<16x32xf32>, vector<16x32xf32>, vector<16x32xf32>, vector<16x32xf32> -> vector<64x32xf32>
    %48 = arith.mulf %47, %46 : vector<64x32xf32>
    %49 = tpu.concatenate %48, %46 in 1 : vector<64x32xf32>, vector<64x32xf32> -> vector<64x64xf32>
    %50 = arith.truncf %49 : vector<64x64xf32> to vector<64x64xbf16>
    %51 = arith.truncf %45 : vector<16x64xf32> to vector<16x64xbf16>
    %cst_20 = arith.constant dense<0.000000e+00> : vector<16x64xf32>
    %52 = tpu.matmul %51, %50, %cst_20 {dimension_numbers = #tpu.dot_dimension_numbers<[1], [0], [0], [1], [0, 0, 1, 1], [], []>} : vector<16x64xbf16>, vector<64x64xbf16>, vector<16x64xf32> -> vector<16x64xf32>
    %53 = vector.extract_strided_slice %52 {offsets = [0, 0], sizes = [16, 32], strides = [1, 1]} : vector<16x64xf32> to vector<16x32xf32>
    %54 = vector.extract_strided_slice %52 {offsets = [0, 32], sizes = [16, 32], strides = [1, 1]} : vector<16x64xf32> to vector<16x32xf32>
    %55 = tpu.reciprocal %54 {approx = true} : vector<16x32xf32> -> vector<16x32xf32>
    %56 = arith.mulf %53, %55 : vector<16x32xf32>
    %57 = arith.truncf %56 : vector<16x32xf32> to vector<16x32xbf16>
    %c0_21 = arith.constant 0 : index
    %c0_22 = arith.constant 0 : index
    %58 = vector.load %arg3[%c0_21, %c0_22] : memref<32x32xbf16, #tpu.memory_space<vmem>>, vector<32x32xbf16>
    %cst_23 = arith.constant dense<0.000000e+00> : vector<16x32xf32>
    %59 = tpu.matmul %57, %58, %cst_23 {dimension_numbers = #tpu.dot_dimension_numbers<[1], [0], [0], [1], [0, 0, 1, 1], [], []>} : vector<16x32xbf16>, vector<32x32xbf16>, vector<16x32xf32> -> vector<16x32xf32>
    %60 = arith.negf %21 : vector<16x64xf32>
    %61 = math.exp %60 : vector<16x64xf32>
    %cst_24 = arith.constant 1.000000e+00 : f32
    %62 = vector.broadcast %cst_24 : f32 to vector<16x64xf32>
    %63 = arith.addf %62, %61 : vector<16x64xf32>
    %64 = arith.divf %62, %63 : vector<16x64xf32>
    %65 = arith.mulf %21, %64 : vector<16x64xf32>
    %66 = arith.mulf %65, %22 : vector<16x64xf32>
    %67 = arith.truncf %66 : vector<16x64xf32> to vector<16x64xbf16>
    %c0_25 = arith.constant 0 : index
    %c0_26 = arith.constant 0 : index
    %68 = vector.load %arg9[%c0_25, %c0_26] : memref<64x32xbf16, #tpu.memory_space<vmem>>, vector<64x32xbf16>
    %cst_27 = arith.constant dense<0.000000e+00> : vector<16x32xf32>
    %69 = tpu.matmul %67, %68, %cst_27 {dimension_numbers = #tpu.dot_dimension_numbers<[1], [0], [0], [1], [0, 0, 1, 1], [], []>} : vector<16x64xbf16>, vector<64x32xbf16>, vector<16x32xf32> -> vector<16x32xf32>
    %70 = arith.addf %0, %59 : vector<16x32xf32>
    %71 = arith.addf %70, %69 : vector<16x32xf32>
    %c0_28 = arith.constant 0 : index
    %c0_29 = arith.constant 0 : index
    %72 = vector.load %arg10[%c0_28, %c0_29] : memref<16x32xf32, #tpu.memory_space<vmem>>, vector<16x32xf32>
    tpu.vector_store %arg10[%c0_28, %c0_29], %71 {strides = array<i32>} : memref<16x32xf32, #tpu.memory_space<vmem>>, vector<16x32xf32>,
    return
  }
}

</mosaic_0001>

<llo_original>
// kernel: tpu_custom_call.1
$region0: #{tpu_custom_call.1}
  #allocation0 [shape = 'u32[]', space=smem, size = 0x4, offset = 0x4, fixed_abs, tag = 'smem constant byte address 0x4 - core index']
  #allocation1 [shape = 'u32[72,128]{1,0:T(1,128)}', space=vmem, size = 0x9000, scoped, tag = 'internal scratch']
  %s0 = inlined_call_operand.vmem [shape: f32[16,32], index: 0, kind: input, shape index: {}]
  %s1 = inlined_call_operand.vmem [shape: f32[1,32], index: 1, kind: input, shape index: {}]
  %s2 = inlined_call_operand.vmem [shape: bf16[32,288], index: 2, kind: input, shape index: {}]
  %s3 = inlined_call_operand.vmem [shape: bf16[32,32], index: 3, kind: input, shape index: {}]
  %s4 = inlined_call_operand.hbm [shape: f32[16,32], index: 4, kind: input, shape index: {}]
  %s5 = inlined_call_operand.hbm [shape: f32[16,32], index: 5, kind: input, shape index: {}]
  %s6 = inlined_call_operand.hbm [shape: f32[16,64], index: 6, kind: input, shape index: {}]
  %s7 = inlined_call_operand.vmem [shape: f32[32,64], index: 7, kind: input, shape index: {}]
  %s8 = inlined_call_operand.vmem [shape: f32[64,32], index: 8, kind: input, shape index: {}]
  %s9 = inlined_call_operand.vmem [shape: bf16[64,32], index: 9, kind: input, shape index: {}]
  %s10 = inlined_call_operand.hbm [shape: f32[16,32], index: 10, kind: output, shape index: {}]
  %s11 = sld [smem:[#allocation0]]
  $region62: #{tpu_custom_call.1} parent=0
    _
  %s13 = ssub.s32 1, %s11
  %s14 = scalar_select 0, %s13, %s11
  $region1: #{tpu_custom_call.1} parent=0
    #allocation2 [shape = 'u8[8192]{0}', space=vmem, size = 0x2000, scoped, tag = 'input window, operand 4, single buffered']
    #allocation3 [shape = 's32[1]{0}', space=sflag, size = 0x4, scoped, tag = 'scoped memory for tpu_custom_call.1']
    #allocation4 [shape = 's32[1]{0}', space=sflag, size = 0x4, scoped, tag = 'scoped memory for tpu_custom_call.1']
    #allocation5 [shape = 'u8[8192]{0}', space=vmem, size = 0x2000, scoped, tag = 'input window, operand 5, single buffered']
    #allocation6 [shape = 's32[1]{0}', space=sflag, size = 0x4, scoped, tag = 'scoped memory for tpu_custom_call.1']
    #allocation7 [shape = 'u8[8192]{0}', space=vmem, size = 0x2000, scoped, tag = 'input window, operand 6, single buffered']
    #allocation8 [shape = 'u8[8192]{0}', space=vmem, size = 0x2000, scoped, tag = 'output window, operand 0, single buffered']
    %15 = vsyncpa [#allocation3], 0
    %16 = vsyncpa [#allocation6], 0
    %17 = vsyncpa [#allocation4], 0
    // Predicated region
    $region2: #{tpu_custom_call.1} parent=1 // pred_check
      _
    $region3: #{tpu_custom_call.1} parent=1 // pred_check_branch
      %19 = sbr.rel (0) target = $region5
    $region4: #{tpu_custom_call.1} parent=1 // pred_region
      _
    $region5: #{tpu_custom_call.1} parent=1 // pred_fallthru
      _
    // Predicated region
    $region6: #{tpu_custom_call.1} parent=1 // pred_check
      _
    $region7: #{tpu_custom_call.1} parent=1 // pred_check_branch
      %21 = sbr.rel (0) target = $region9
    $region8: #{tpu_custom_call.1} parent=1 // pred_region
      _
    $region9: #{tpu_custom_call.1} parent=1 // pred_fallthru
      _
    // Predicated region
    $region10: #{tpu_custom_call.1} parent=1 // pred_check
      _
    $region11: #{tpu_custom_call.1} parent=1 // pred_check_branch
      %23 = sbr.rel (0) target = $region13
    $region12: #{tpu_custom_call.1} parent=1 // pred_region
      _
    $region13: #{tpu_custom_call.1} parent=1 // pred_fallthru
      _
    // Predicated region
    $region14: #{tpu_custom_call.1} parent=1 // pred_check
      _
    $region15: #{tpu_custom_call.1} parent=1 // pred_check_branch
      %25 = sbr.rel (0) target = $region17
    $region16: #{tpu_custom_call.1} parent=1 // pred_region
      _
    $region17: #{tpu_custom_call.1} parent=1 // pred_fallthru
      _
    // Predicated region
    $region18: #{tpu_custom_call.1} parent=1 // pred_check
      _
    $region19: #{tpu_custom_call.1} parent=1 // pred_check_branch
      %27 = sbr.rel (0) target = $region21
    $region20: #{tpu_custom_call.1} parent=1 // pred_region
      %29 = vsyncadd [#allocation3], 0
      %s30 = sshll.u32 %s4, 4
      %s31 = int_to_ptr.hbm [resolvable:$true] %s30
      %s32 = sshll.u32 [#allocation2], 4
      %s33 = int_to_ptr.vmem [resolvable:$true] %s32
      %38 = dma.hbm_to_vmem [thread:$0]  %s31, 256, %s33, [#allocation3], 128, 128, 8
    $region21: #{tpu_custom_call.1} parent=1 // pred_fallthru
      _
    // Predicated region
    $region22: #{tpu_custom_call.1} parent=1 // pred_check
      _
    $region23: #{tpu_custom_call.1} parent=1 // pred_check_branch
      %40 = sbr.rel (0) target = $region25
    $region24: #{tpu_custom_call.1} parent=1 // pred_region
      %42 = vsyncadd [#allocation6], 0
      %s43 = sshll.u32 %s5, 4
      %s44 = int_to_ptr.hbm [resolvable:$true] %s43
      %s45 = sshll.u32 [#allocation5], 4
      %s46 = int_to_ptr.vmem [resolvable:$true] %s45
      %51 = dma.hbm_to_vmem [thread:$0]  %s44, 256, %s46, [#allocation6], 128, 128, 8
    $region25: #{tpu_custom_call.1} parent=1 // pred_fallthru
      _
    // Predicated region
    $region26: #{tpu_custom_call.1} parent=1 // pred_check
      _
    $region27: #{tpu_custom_call.1} parent=1 // pred_check_branch
      %53 = sbr.rel (0) target = $region29
    $region28: #{tpu_custom_call.1} parent=1 // pred_region
      %55 = vsyncadd [#allocation6], 0
      %s56 = sshll.u32 %s6, 4
      %s57 = int_to_ptr.hbm [resolvable:$true] %s56
      %s58 = sshll.u32 [#allocation7], 4
      %s59 = int_to_ptr.vmem [resolvable:$true] %s58
      %64 = dma.hbm_to_vmem [thread:$0]  %s57, 256, %s59, [#allocation6], 128, 128, 8
    $region29: #{tpu_custom_call.1} parent=1 // pred_fallthru
      _
    // Predicated region
    $region30: #{tpu_custom_call.1} parent=1 // pred_check
      _
    $region31: #{tpu_custom_call.1} parent=1 // pred_check_branch
      %66 = sbr.rel (0) target = $region33
    $region32: #{tpu_custom_call.1} parent=1 // pred_region
      _
    $region33: #{tpu_custom_call.1} parent=1 // pred_fallthru
      _
    // Predicated region
    $region34: #{tpu_custom_call.1} parent=1 // pred_check
      _
    $region35: #{tpu_custom_call.1} parent=1 // pred_check_branch
      %68 = sbr.rel (0) target = $region37
    $region36: #{tpu_custom_call.1} parent=1 // pred_region
      _
    $region37: #{tpu_custom_call.1} parent=1 // pred_fallthru
      _
    // Predicated region
    $region38: #{tpu_custom_call.1} parent=1 // pred_check
      _
    $region39: #{tpu_custom_call.1} parent=1 // pred_check_branch
      %70 = sbr.rel (0) target = $region41
    $region40: #{tpu_custom_call.1} parent=1 // pred_region
      _
    $region41: #{tpu_custom_call.1} parent=1 // pred_fallthru
      _
    // Predicated region
    $region42: #{tpu_custom_call.1} parent=1 // pred_check
      _
    $region43: #{tpu_custom_call.1} parent=1 // pred_check_branch
      %72 = sbr.rel (0) target = $region45
    $region44: #{tpu_custom_call.1} parent=1 // pred_region
      %74 = dma.done [#allocation3], 256
    $region45: #{tpu_custom_call.1} parent=1 // pred_fallthru
      _
    // Predicated region
    $region46: #{tpu_custom_call.1} parent=1 // pred_check
      _
    $region47: #{tpu_custom_call.1} parent=1 // pred_check_branch
      %76 = sbr.rel (0) target = $region49
    $region48: #{tpu_custom_call.1} parent=1 // pred_region
      %78 = dma.done [#allocation6], 256
    $region49: #{tpu_custom_call.1} parent=1 // pred_fallthru
      _
    // Predicated region
    $region50: #{tpu_custom_call.1} parent=1 // pred_check
      _
    $region51: #{tpu_custom_call.1} parent=1 // pred_check_branch
      %80 = sbr.rel (0) target = $region53
    $region52: #{tpu_custom_call.1} parent=1 // pred_region
      %82 = dma.done [#allocation6], 256
    $region53: #{tpu_custom_call.1} parent=1 // pred_fallthru
      _
    %v84 = vld [vmem:[%s0] sm:$0xff]
    %v85 = vld [vmem:[%s0 + $0x8] sm:$0xff]
    %v86 = vmul.f32 %v84, %v84
    %v87 = vmul.f32 %v85, %v85
    %vm88 = vcmask 261120
    %v89 = vsel %vm88, %v86, 0.0
    %90 = vadd.xlane.f32.xlu0 %v89
    %v91 = vpop.xlane.xlu0 %90
    %v92 = vsel %vm88, %v87, 0.0
    %93 = vadd.xlane.f32.xlu0 %v92
    %v94 = vpop.xlane.xlu0 %93
    %v95 = vrcp.pop 32.0
    %v96 = vmul.f32 32.0, %v95
    %v97 = vsub.f32 1.0, %v96
    %v98 = vmul.f32 %v95, %v97
    %v99 = vadd.f32 %v95, %v98
    %vm100 = vweird.f32 %v95
    %v101 = vsel %vm100, %v95, %v99
    %v102 = vmul.f32 %v91, %v101
    %v103 = vmul.f32 %v94, %v101
    %v104 = vadd.f32 %v102, 1e-06
    %v105 = vadd.f32 %v103, 1e-06
    %v106 = vrsqrt.pop %v104
    %v107 = vmul.f32 %v106, %v104
    %v108 = vmul.f32 %v107, %v106
    %v109 = vmul.f32 0.5, %v108
    %v110 = vsub.f32 1.5, %v109
    %v111 = vmul.f32 %v106, %v110
    %vm112 = vweird.f32 %v104
    %vm113 = vweird.f32 %v106
    %vm114 = vmor %vm112, %vm113
    %v115 = vsel %vm114, %v106, %v111
    %v116 = vrsqrt.pop %v105
    %v117 = vmul.f32 %v116, %v105
    %v118 = vmul.f32 %v117, %v116
    %v119 = vmul.f32 0.5, %v118
    %v120 = vsub.f32 1.5, %v119
    %v121 = vmul.f32 %v116, %v120
    %vm122 = vweird.f32 %v105
    %vm123 = vweird.f32 %v116
    %vm124 = vmor %vm122, %vm123
    %v125 = vsel %vm124, %v116, %v121
    %v126 = vmul.f32 %v84, %v115
    %v127 = vmul.f32 %v85, %v125
    %v128 = vld [vmem:[%s1] sm:$0x1]
    %v130 = vperm.slane %v128, 0
    %v132 = vmul.f32 %v126, %v130
    %v133 = vmul.f32 %v127, %v130
    %v134 = vpack.c.bf16 %v133, %v132
    %v135 = vld [vmem:[%s2] sm:$0xff]
    %v136 = vld [vmem:[%s2 + $0x8] sm:$0xf]
    %v137 = vld [vmem:[%s2 + $0xc] sm:$0xff]
    %v138 = vld [vmem:[%s2 + $0x14] sm:$0xf]
    %v139 = vld [vmem:[%s2 + $0x18] sm:$0xff]
    %v140 = vld [vmem:[%s2 + $0x20] sm:$0xf]
    %v141 = vld [vmem:[%s2 + $0x24] sm:$0xff]
    %v142 = vld [vmem:[%s2 + $0x2c] sm:$0xf]
    %v151 = vunpack.c.l.b16 %v135
    %v152 = vunpack.c.h.b16 %v135
    %v153 = vunpack.c.l.b16 %v136
    %v154 = vunpack.c.l.b16 %v137
    %v155 = vunpack.c.h.b16 %v137
    %v156 = vunpack.c.l.b16 %v138
    %v157 = vunpack.c.l.b16 %v139
    %v158 = vunpack.c.h.b16 %v139
    %v159 = vunpack.c.l.b16 %v140
    %v160 = vunpack.c.l.b16 %v141
    %v161 = vunpack.c.h.b16 %v141
    %v162 = vunpack.c.l.b16 %v142
    %v163 = vpack.c.b16 %v154, %v151
    %v164 = vpack.c.b16 %v155, %v152
    %v165 = vpack.c.b16 %v156, %v153
    %v166 = vpack.c.b16 %v160, %v157
    %v167 = vpack.c.b16 %v161, %v158
    %v168 = vpack.c.b16 %v162, %v159
    %v176 = vsel %vm88, %v134, 0
    %178 = vmatpush.bf16.msra.mxu0 0
    %179 = vmatpush.bf16.msra.mxu0 0
    %180 = vmatpush.bf16.msra.mxu0 0
    %181 = vmatpush.bf16.msra.mxu0 0
    %182 = vmatpush.bf16.msra.mxu0 0
    %183 = vmatpush.bf16.msra.mxu0 0
    %184 = vmatpush.bf16.msra.mxu0 %v166
    %185 = vmatpush.bf16.msra.mxu0 %v163
    %186 = vmatmul.bf16.gmra.mxu0 %v176
    %v187 = vpop.f32.mrf.mxu0
    %v188 = vadd.f32 0.0, %v187
    %v189 = vpop.f32.mrf.mxu0
    %v190 = vadd.f32 0.0, %v189
    %191 = vdwg.mxu0
    %192 = vmatpush.bf16.msra.mxu0 0
    %193 = vmatpush.bf16.msra.mxu0 0
    %194 = vmatpush.bf16.msra.mxu0 0
    %195 = vmatpush.bf16.msra.mxu0 0
    %196 = vmatpush.bf16.msra.mxu0 0
    %197 = vmatpush.bf16.msra.mxu0 0
    %198 = vmatpush.bf16.msra.mxu0 %v167
    %199 = vmatpush.bf16.msra.mxu0 %v164
    %200 = vmatmul.bf16.gmra.mxu0 %v176
    %v201 = vpop.f32.mrf.mxu0
    %v202 = vadd.f32 0.0, %v201
    %v203 = vpop.f32.mrf.mxu0
    %v204 = vadd.f32 0.0, %v203
    %205 = vdwg.mxu0
    %206 = vmatpush.bf16.msra.mxu0 0
    %207 = vmatpush.bf16.msra.mxu0 0
    %208 = vmatpush.bf16.msra.mxu0 0
    %209 = vmatpush.bf16.msra.mxu0 0
    %210 = vmatpush.bf16.msra.mxu0 0
    %211 = vmatpush.bf16.msra.mxu0 0
    %212 = vmatpush.bf16.msra.mxu0 %v168
    %213 = vmatpush.bf16.msra.mxu0 %v165
    %214 = vmatmul.bf16.gmra.mxu0 %v176
    %v215 = vpop.f32.mrf.mxu0
    %v216 = vadd.f32 0.0, %v215
    %v217 = vpop.f32.mrf.mxu0
    %v218 = vadd.f32 0.0, %v217
    %219 = vdwg.mxu0
    %v220 = vld [vmem:[#allocation2] sm:$0xff]
    %v221 = vld [vmem:[#allocation2 + $0x8] sm:$0xff]
    %v222 = vld [vmem:[#allocation5] sm:$0xff]
    %v223 = vld [vmem:[#allocation5 + $0x8] sm:$0xff]
    %v224 = vmul.f32 %v188, %v220
    %v225 = vmul.f32 %v190, %v221
    %228 = vrot.lane.b32.xlu0 %v222, 32
    %v229 = vpop.permute.xlu0 %228
    %230 = vrot.lane.b32.xlu0 %v223, 32
    %v231 = vpop.permute.xlu0 %230
    %v234 = vmul.f32 %v188, %v229
    %v235 = vmul.f32 %v190, %v231
    %238 = vrot.lane.b32.xlu0 %v234, 96
    %v239 = vpop.permute.xlu0 %238
    %240 = vrot.lane.b32.xlu0 %v235, 96
    %v241 = vpop.permute.xlu0 %240
    %v244 = vadd.f32 %v224, %v239
    %v245 = vadd.f32 %v225, %v241
    %248 = vrot.lane.b32.xlu0 %v220, 64
    %v249 = vpop.permute.xlu0 %248
    %250 = vrot.lane.b32.xlu0 %v221, 64
    %v251 = vpop.permute.xlu0 %250
    %v254 = vmul.f32 %v188, %v249
    %v255 = vmul.f32 %v190, %v251
    %256 = vrot.lane.b32.xlu0 %v222, 96
    %v257 = vpop.permute.xlu0 %256
    %258 = vrot.lane.b32.xlu0 %v223, 96
    %v259 = vpop.permute.xlu0 %258
    %v262 = vmul.f32 %v188, %v257
    %v263 = vmul.f32 %v190, %v259
    %266 = vrot.lane.b32.xlu0 %v262, 96
    %v267 = vpop.permute.xlu0 %266
    %268 = vrot.lane.b32.xlu0 %v263, 96
    %v269 = vpop.permute.xlu0 %268
    %v272 = vadd.f32 %v254, %v267
    %v273 = vadd.f32 %v255, %v269
    %276 = vrot.lane.b32.xlu0 %v272, 64
    %v277 = vpop.permute.xlu0 %276
    %278 = vrot.lane.b32.xlu0 %v273, 64
    %v279 = vpop.permute.xlu0 %278
    %282 = vxpose.xlu0.b32.start [1/16] %v277, 128
    %283 = vxpose.xlu0.b32.cont [2/16] %v279, 128
    %284 = vxpose.xlu0.b32.cont [3/16] 0.0, 128
    %285 = vxpose.xlu0.b32.cont [4/16] 0.0, 128
    %286 = vxpose.xlu0.b32.cont [5/16] 0.0, 128
    %287 = vxpose.xlu0.b32.cont [6/16] 0.0, 128
    %288 = vxpose.xlu0.b32.cont [7/16] 0.0, 128
    %289 = vxpose.xlu0.b32.cont [8/16] 0.0, 128
    %290 = vxpose.xlu0.b32.cont [9/16] 0.0, 128
    %291 = vxpose.xlu0.b32.cont [10/16] 0.0, 128
    %292 = vxpose.xlu0.b32.cont [11/16] 0.0, 128
    %293 = vxpose.xlu0.b32.cont [12/16] 0.0, 128
    %294 = vxpose.xlu0.b32.cont [13/16] 0.0, 128
    %295 = vxpose.xlu0.b32.cont [14/16] 0.0, 128
    %296 = vxpose.xlu0.b32.cont [15/16] 0.0, 128
    %297 = vxpose.xlu0.b32.end [16/16] 0.0, 128
    %v298 = vpop.trf.xlu0
    %v299 = vpop.trf.xlu0
    %v300 = vpop.trf.xlu0
    %v301 = vpop.trf.xlu0
    %v302 = vpop.trf.xlu0
    %v303 = vpop.trf.xlu0
    %v304 = vpop.trf.xlu0
    %v305 = vpop.trf.xlu0
    %v306 = vpop.trf.xlu0
    %v307 = vpop.trf.xlu0
    %v308 = vpop.trf.xlu0
    %v309 = vpop.trf.xlu0
    %v310 = vpop.trf.xlu0
    %v311 = vpop.trf.xlu0
    %v312 = vpop.trf.xlu0
    %v313 = vpop.trf.xlu0
    %318 = vrot.lane.b32.xlu0 %v298, 16
    %v319 = vpop.permute.xlu0 %318
    %320 = vrot.lane.b32.xlu0 %v299, 16
    %v321 = vpop.permute.xlu0 %320
    %322 = vrot.lane.b32.xlu0 %v300, 16
    %v323 = vpop.permute.xlu0 %322
    %324 = vrot.lane.b32.xlu0 %v301, 16
    %v325 = vpop.permute.xlu0 %324
    %330 = vrot.lane.b32.xlu0 %v298, 32
    %v331 = vpop.permute.xlu0 %330
    %332 = vrot.lane.b32.xlu0 %v299, 32
    %v333 = vpop.permute.xlu0 %332
    %334 = vrot.lane.b32.xlu0 %v300, 32
    %v335 = vpop.permute.xlu0 %334
    %336 = vrot.lane.b32.xlu0 %v301, 32
    %v337 = vpop.permute.xlu0 %336
    %342 = vrot.lane.b32.xlu0 %v298, 48
    %v343 = vpop.permute.xlu0 %342
    %344 = vrot.lane.b32.xlu0 %v299, 48
    %v345 = vpop.permute.xlu0 %344
    %346 = vrot.lane.b32.xlu0 %v300, 48
    %v347 = vpop.permute.xlu0 %346
    %348 = vrot.lane.b32.xlu0 %v301, 48
    %v349 = vpop.permute.xlu0 %348
    %vm354 = vcmask 130048
    %v355 = vsel %vm354, %v298, %v319
    %v356 = vsel %vm354, %v299, %v321
    %v357 = vsel %vm354, %v300, %v323
    %v358 = vsel %vm354, %v301, %v325
    %v359 = vsel %vm88, %v355, %v331
    %v360 = vsel %vm88, %v356, %v333
    %v361 = vsel %vm88, %v357, %v335
    %v362 = vsel %vm88, %v358, %v337
    %vm363 = vcmask 392192
    %v364 = vsel %vm363, %v359, %v343
    %v365 = vsel %vm363, %v360, %v345
    %v366 = vsel %vm363, %v361, %v347
    %v367 = vsel %vm363, %v362, %v349
    %v368 = vld [vmem:[%s7] sm:$0xff]
    %v369 = vld [vmem:[%s7 + $0x8] sm:$0xff]
    %v370 = vld [vmem:[%s7 + $0x10] sm:$0xff]
    %v371 = vld [vmem:[%s7 + $0x18] sm:$0xff]
    %v372 = vmul.f32 %v364, %v368
    %v373 = vmul.f32 %v365, %v369
    %v374 = vmul.f32 %v366, %v370
    %v375 = vmul.f32 %v367, %v371
    %v376 = vpack.c.bf16 %v373, %v372
    %v377 = vpack.c.bf16 %v375, %v374
    %v378 = vpack.c.bf16 %v245, %v244
    %v379 = vld [vmem:[#allocation7] sm:$0xff]
    %v380 = vld [vmem:[#allocation7 + $0x8] sm:$0xff]
    %v382 = vsel %vm88, %v378, 0
    %384 = vmatpush.bf16.msra.mxu0 0
    %385 = vmatpush.bf16.msra.mxu0 0
    %386 = vmatpush.bf16.msra.mxu0 0
    %387 = vmatpush.bf16.msra.mxu0 0
    %388 = vmatpush.bf16.msra.mxu0 0
    %389 = vmatpush.bf16.msra.mxu0 0
    %390 = vmatpush.bf16.msra.mxu0 %v377
    %391 = vmatpush.bf16.msra.mxu0 %v376
    %392 = vmatmul.bf16.gmra.mxu0 %v382
    %v393 = vpop.f32.mrf.mxu0
    %v394 = vadd.f32 %v379, %v393
    %v395 = vpop.f32.mrf.mxu0
    %v396 = vadd.f32 %v380, %v395
    %397 = vdwg.mxu0
    %vm398 = vcmask 523264
    %v399 = vsel %vm398, %v394, -inf
    %400 = vmax.xlane.f32.xlu0 %v399
    %v401 = vpop.xlane.xlu0 %400
    %v402 = vsel %vm398, %v396, -inf
    %403 = vmax.xlane.f32.xlu0 %v402
    %v404 = vpop.xlane.xlu0 %403
    %v405 = vsub.f32 %v394, %v401
    %v406 = vsub.f32 %v396, %v404
    %v407 = vmul.f32 %v405, 1.442695
    %v408 = vpow.pop %v407
    %v409 = vmul.f32 %v406, 1.442695
    %v410 = vpow.pop %v409
    %v411 = vld [vmem:[%s8] sm:$0xff]
    %v412 = vld [vmem:[%s8 + $0x8] sm:$0xff]
    %v413 = vld [vmem:[%s8 + $0x10] sm:$0xff]
    %v414 = vld [vmem:[%s8 + $0x18] sm:$0xff]
    %v415 = vld [vmem:[%s8 + $0x20] sm:$0xff]
    %v416 = vld [vmem:[%s8 + $0x28] sm:$0xff]
    %v417 = vld [vmem:[%s8 + $0x30] sm:$0xff]
    %v418 = vld [vmem:[%s8 + $0x38] sm:$0xff]
    %v419 = vmul.f32 %v216, %v411
    %v420 = vmul.f32 %v218, %v412
    %v421 = vmul.f32 %v216, %v413
    %v422 = vmul.f32 %v218, %v414
    %v423 = vmul.f32 %v216, %v415
    %v424 = vmul.f32 %v218, %v416
    %v425 = vmul.f32 %v216, %v417
    %v426 = vmul.f32 %v218, %v418
    %435 = vrot.lane.b32.xlu0 %v411, 32
    %v436 = vpop.permute.xlu0 %435
    %437 = vrot.lane.b32.xlu0 %v412, 32
    %v438 = vpop.permute.xlu0 %437
    %439 = vrot.lane.b32.xlu0 %v413, 32
    %v440 = vpop.permute.xlu0 %439
    %441 = vrot.lane.b32.xlu0 %v414, 32
    %v442 = vpop.permute.xlu0 %441
    %443 = vrot.lane.b32.xlu0 %v415, 32
    %v444 = vpop.permute.xlu0 %443
    %445 = vrot.lane.b32.xlu0 %v416, 32
    %v446 = vpop.permute.xlu0 %445
    %447 = vrot.lane.b32.xlu0 %v417, 32
    %v448 = vpop.permute.xlu0 %447
    %449 = vrot.lane.b32.xlu0 %v418, 32
    %v450 = vpop.permute.xlu0 %449
    %v459 = vsel %vm88, %v419, %v436
    %v460 = vsel %vm88, %v420, %v438
    %v461 = vsel %vm88, %v421, %v440
    %v462 = vsel %vm88, %v422, %v442
    %v463 = vsel %vm88, %v423, %v444
    %v464 = vsel %vm88, %v424, %v446
    %v465 = vsel %vm88, %v425, %v448
    %v466 = vsel %vm88, %v426, %v450
    %v467 = vpack.c.bf16 %v460, %v459
    %v468 = vpack.c.bf16 %v462, %v461
    %v469 = vpack.c.bf16 %v464, %v463
    %v470 = vpack.c.bf16 %v466, %v465
    %v471 = vpack.c.bf16 %v410, %v408
    %v473 = vsel %vm398, %v471, 0
    %475 = vmatpush.bf16.msra.mxu0 0
    %476 = vmatpush.bf16.msra.mxu0 0
    %477 = vmatpush.bf16.msra.mxu0 0
    %478 = vmatpush.bf16.msra.mxu0 0
    %479 = vmatpush.bf16.msra.mxu0 %v470
    %480 = vmatpush.bf16.msra.mxu0 %v469
    %481 = vmatpush.bf16.msra.mxu0 %v468
    %482 = vmatpush.bf16.msra.mxu0 %v467
    %483 = vmatmul.bf16.gmra.mxu0 %v473
    %v484 = vpop.f32.mrf.mxu0
    %v485 = vadd.f32 0.0, %v484
    %v486 = vpop.f32.mrf.mxu0
    %v487 = vadd.f32 0.0, %v486
    %488 = vdwg.mxu0
    %v489 = vrcp.pop %v485
    %v490 = vrcp.pop %v487
    %493 = vrot.lane.b32.xlu0 %v489, 96
    %v494 = vpop.permute.xlu0 %493
    %495 = vrot.lane.b32.xlu0 %v490, 96
    %v496 = vpop.permute.xlu0 %495
    %v499 = vmul.f32 %v485, %v494
    %v500 = vmul.f32 %v487, %v496
    %v501 = vpack.c.bf16 %v500, %v499
    %v502 = vld [vmem:[%s3] sm:$0xf]
    %v503 = vld [vmem:[%s3 + $0x4] sm:$0xf]
    %v504 = vld [vmem:[%s3 + $0x8] sm:$0xf]
    %v505 = vld [vmem:[%s3 + $0xc] sm:$0xf]
    %v510 = vunpack.c.l.b16 %v502
    %v511 = vunpack.c.l.b16 %v503
    %v512 = vunpack.c.l.b16 %v504
    %v513 = vunpack.c.l.b16 %v505
    %v514 = vpack.c.b16 %v511, %v510
    %v515 = vpack.c.b16 %v513, %v512
    %v519 = vsel %vm88, %v501, 0
    %521 = vmatpush.bf16.msra.mxu0 0
    %522 = vmatpush.bf16.msra.mxu0 0
    %523 = vmatpush.bf16.msra.mxu0 0
    %524 = vmatpush.bf16.msra.mxu0 0
    %525 = vmatpush.bf16.msra.mxu0 0
    %526 = vmatpush.bf16.msra.mxu0 0
    %527 = vmatpush.bf16.msra.mxu0 %v515
    %528 = vmatpush.bf16.msra.mxu0 %v514
    %529 = vmatmul.bf16.gmra.mxu0 %v519
    %v530 = vpop.f32.mrf.mxu0
    %v531 = vadd.f32 0.0, %v530
    %v532 = vpop.f32.mrf.mxu0
    %v533 = vadd.f32 0.0, %v532
    %534 = vdwg.mxu0
    %v535 = vxor.u32 %v202, 2147483648
    %v536 = vxor.u32 %v204, 2147483648
    %v537 = vmul.f32 %v535, 1.442695
    %v538 = vpow.pop %v537
    %v539 = vmul.f32 %v536, 1.442695
    %v540 = vpow.pop %v539
    %v541 = vadd.f32 %v538, 1.0
    %v542 = vadd.f32 %v540, 1.0
    %v543 = vrcp.pop %v541
    %v544 = vmul.f32 %v541, %v543
    %v545 = vsub.f32 1.0, %v544
    %v546 = vmul.f32 %v543, %v545
    %v547 = vadd.f32 %v543, %v546
    %vm548 = vweird.f32 %v541
    %vm549 = vweird.f32 %v543
    %vm550 = vmor %vm548, %vm549
    %v551 = vsel %vm550, %v543, %v547
    %v552 = vand.u32 2147483647, %v541
    %vm553 = vcmp.eq.f32.partialorder %v552, 8.507059e+37
    %v554 = vand.u32 %v541, 2147483648
    %v555 = vor.u32 1.1754944e-38, %v554
    %v556 = vsel %vm553, %v555, %v551
    %v557 = vmul.f32 1.0, %v556
    %v558 = vrcp.pop %v542
    %v559 = vmul.f32 %v542, %v558
    %v560 = vsub.f32 1.0, %v559
    %v561 = vmul.f32 %v558, %v560
    %v562 = vadd.f32 %v558, %v561
    %vm563 = vweird.f32 %v542
    %vm564 = vweird.f32 %v558
    %vm565 = vmor %vm563, %vm564
    %v566 = vsel %vm565, %v558, %v562
    %v567 = vand.u32 2147483647, %v542
    %vm568 = vcmp.eq.f32.partialorder %v567, 8.507059e+37
    %v569 = vand.u32 %v542, 2147483648
    %v570 = vor.u32 1.1754944e-38, %v569
    %v571 = vsel %vm568, %v570, %v566
    %v572 = vmul.f32 1.0, %v571
    %v573 = vmul.f32 %v202, %v557
    %v574 = vmul.f32 %v204, %v572
    %577 = vrot.lane.b32.xlu0 %v202, 64
    %v578 = vpop.permute.xlu0 %577
    %579 = vrot.lane.b32.xlu0 %v204, 64
    %v580 = vpop.permute.xlu0 %579
    %v583 = vmul.f32 %v573, %v578
    %v584 = vmul.f32 %v574, %v580
    %v585 = vpack.c.bf16 %v584, %v583
    %v586 = vld [vmem:[%s9] sm:$0xf]
    %v587 = vld [vmem:[%s9 + $0x4] sm:$0xf]
    %v588 = vld [vmem:[%s9 + $0x8] sm:$0xf]
    %v589 = vld [vmem:[%s9 + $0xc] sm:$0xf]
    %v590 = vld [vmem:[%s9 + $0x10] sm:$0xf]
    %v591 = vld [vmem:[%s9 + $0x14] sm:$0xf]
    %v592 = vld [vmem:[%s9 + $0x18] sm:$0xf]
    %v593 = vld [vmem:[%s9 + $0x1c] sm:$0xf]
    %v602 = vunpack.c.l.b16 %v586
    %v603 = vunpack.c.l.b16 %v587
    %v604 = vunpack.c.l.b16 %v588
    %v605 = vunpack.c.l.b16 %v589
    %v606 = vunpack.c.l.b16 %v590
    %v607 = vunpack.c.l.b16 %v591
    %v608 = vunpack.c.l.b16 %v592
    %v609 = vunpack.c.l.b16 %v593
    %v610 = vpack.c.b16 %v603, %v602
    %v611 = vpack.c.b16 %v605, %v604
    %v612 = vpack.c.b16 %v607, %v606
    %v613 = vpack.c.b16 %v609, %v608
    %v619 = vsel %vm398, %v585, 0
    %621 = vmatpush.bf16.msra.mxu0 0
    %622 = vmatpush.bf16.msra.mxu0 0
    %623 = vmatpush.bf16.msra.mxu0 0
    %624 = vmatpush.bf16.msra.mxu0 0
    %625 = vmatpush.bf16.msra.mxu0 %v613
    %626 = vmatpush.bf16.msra.mxu0 %v612
    %627 = vmatpush.bf16.msra.mxu0 %v611
    %628 = vmatpush.bf16.msra.mxu0 %v610
    %629 = vmatmul.bf16.gmra.mxu0 %v619
    %v630 = vpop.f32.mrf.mxu0
    %v631 = vadd.f32 0.0, %v630
    %v632 = vpop.f32.mrf.mxu0
    %v633 = vadd.f32 0.0, %v632
    %634 = vdwg.mxu0
    %v635 = vadd.f32 %v84, %v531
    %v636 = vadd.f32 %v85, %v533
    %v637 = vadd.f32 %v635, %v631
    %v638 = vadd.f32 %v636, %v633
    %639 = vst.msk [vmem:[#allocation8] sm:$0xff] %vm88, %v637
    %640 = vst.msk [vmem:[#allocation8 + $0x8] sm:$0xff] %vm88, %v638
    // Predicated region
    $region54: #{tpu_custom_call.1} parent=1 // pred_check
      _
    $region55: #{tpu_custom_call.1} parent=1 // pred_check_branch
      %642 = sbr.rel (0) target = $region57
    $region56: #{tpu_custom_call.1} parent=1 // pred_region
      %644 = vsyncadd [#allocation4], 0
      %s645 = sshll.u32 [#allocation8], 4
      %s646 = int_to_ptr.vmem [resolvable:$true] %s645
      %s647 = sshll.u32 %s10, 4
      %s648 = int_to_ptr.hbm [resolvable:$true] %s647
      %653 = dma.vmem_to_hbm [thread:$0]  %s646, 256, %s648, [#allocation4], 128, 128, 8
    $region57: #{tpu_custom_call.1} parent=1 // pred_fallthru
      _
    // Predicated region
    $region58: #{tpu_custom_call.1} parent=1 // pred_check
      _
    $region59: #{tpu_custom_call.1} parent=1 // pred_check_branch
      %655 = sbr.rel (0) target = $region61
    $region60: #{tpu_custom_call.1} parent=1 // pred_region
      %657 = dma.done [#allocation4], 256
    $region61: #{tpu_custom_call.1} parent=1 // pred_fallthru
      _
    %658 = vsyncpa [#allocation3], 1
    %659 = vsyncpa [#allocation6], 1
    %660 = vsyncpa [#allocation4], 1

</llo_original>
